<compile_context>
chip_gen: v7x
topology: tpu7x:2x2x1
jax: 0.10.0
libtpu: 0.0.40
codegen_flags: <defaults>
</compile_context>

<pallas_src>
import math
import functools

import jax
import jax.numpy as jnp
from jax.experimental import pallas as pl
from jax.experimental.pallas import tpu as pltpu


def qnet_kernel(x_ref, w1_ref, b1_ref, w2_ref, b2_ref, wz_ref, bz_ref, seg_ref,
                out_ref, *, num_actions, atoms):
    # ---- hidden MLP: Linear -> ReLU -> Linear -> ReLU ----
    x = x_ref[...]
    h = jnp.dot(x, w1_ref[...], preferred_element_type=jnp.float32) + b1_ref[...]
    h = jnp.maximum(h, 0.0)
    h = jnp.dot(h, w2_ref[...], preferred_element_type=jnp.float32) + b2_ref[...]
    h = jnp.maximum(h, 0.0)

    # ---- fused head: dueling aggregation folded into W_z / b_z ----
    z = jnp.dot(h, wz_ref[...], preferred_element_type=jnp.float32) + bz_ref[...]  # [TB, A*N]

    # ---- per-action max subtraction (numerical stability, matches reference) ----
    # Static loop over a small constant A; slices are static 8*k lane offsets.
    parts = []
    for a in range(num_actions):
        seg = z[:, a * atoms:(a + 1) * atoms]
        parts.append(seg - jnp.max(seg, axis=-1, keepdims=True))
    z = jnp.concatenate(parts, axis=-1)                                             # [TB, A*N]

    # ---- segmented (per-action) softmax over atoms, lane-dense ----
    e = jnp.exp(z)
    # Per-group sums broadcast back across each group's N lanes with a single
    # matmul against the precomputed block-diagonal-ones matrix S.
    denom = jnp.dot(e, seg_ref[...], preferred_element_type=jnp.float32)            # [TB, A*N]
    # denom >= 1 (each group contains exp(0) = 1), so the exact reciprocal is safe.
    p = e * pl.reciprocal(denom, approx=False)
    out_ref[...] = p.astype(out_ref.dtype)


def _round_up(v, m):
    return ((v + m - 1) // m) * m


def qnet_forward(x, params, output_nums, atom_nums, block_b=512, min_grid_steps=1):
    """min_grid_steps: set to 2 on v7x (2 TensorCores/chip) so the 'parallel'
    batch axis shards across both cores; leave at 1 on v5e/v6e (single TC)."""
    B, in_dim = x.shape
    A, N = output_nums, atom_nums
    an = A * N

    # --- hoisted per-call (NOT per-tile) preprocessing ---
    # Effective noisy weights.
    w_adv = params["wadv_mu"] + params["wadv_sigma"] * params["wadv_eps"]   # [H, A*N]
    b_adv = params["badv_mu"] + params["badv_sigma"] * params["badv_eps"]   # [1, A*N]

    # Dueling-aggregation fold:
    #   z = adv + (val - adv_mean) @ tile_mat,  adv_mean = adv @ avg_mat
    # Everything is affine in h, so fold into one [H, A*N] head matrix.
    atom_idx = jnp.arange(an) % N
    group_idx = jnp.arange(an) // N
    avg_mat = (atom_idx[:, None] == jnp.arange(N)[None, :]).astype(jnp.float32) / A  # [A*N, N]
    tile_mat = (jnp.arange(N)[:, None] == atom_idx[None, :]).astype(jnp.float32)     # [N, A*N]
    w_z = w_adv + (params["wval"] - w_adv @ avg_mat) @ tile_mat                      # [H, A*N]
    b_z = b_adv + (params["bval"] - b_adv @ avg_mat) @ tile_mat                      # [1, A*N]

    # Block-diagonal ones matrix for the segmented-softmax denominator.
    seg_mat = (group_idx[:, None] == group_idx[None, :]).astype(jnp.float32)         # [A*N, A*N]

    # --- batch tiling ---
    if B <= block_b and min_grid_steps <= 1:
        tb = B                      # single full-extent block (fewest grid steps)
    else:
        tb = min(_round_up(block_b, 8),
                 _round_up(pl.cdiv(B, max(min_grid_steps, 1)), 8))
        tb = max(tb, 8)
        if tb >= B:
            tb = B                  # don't pad past the batch for tiny B
    grid = (pl.cdiv(B, tb),)

    def resident(arr):
        # Whole-array block + constant index_map -> stays VMEM-resident across
        # the batch grid; only x and out are streamed/double-buffered.
        return pl.BlockSpec(arr.shape, lambda i: (0,) * arr.ndim)

    weights = (params["w1"], params["b1"], params["w2"], params["b2"],
               w_z, b_z, seg_mat)

    kernel = functools.partial(qnet_kernel, num_actions=A, atoms=N)
    out = pl.pallas_call(
        kernel,
        out_shape=jax.ShapeDtypeStruct((B, an), jnp.float32),
        grid=grid,
        in_specs=[pl.BlockSpec((tb, in_dim), lambda i: (i, 0))]
                 + [resident(w) for w in weights],
        out_specs=pl.BlockSpec((tb, an), lambda i: (i, 0)),
        compiler_params=pltpu.CompilerParams(
            dimension_semantics=("parallel",),
            vmem_limit_bytes=32 * 1024 * 1024),
    )(x, *weights)

    # Lane-dense kernel output; reshape to the module's (B, A, N) in the wrapper.
    return out.reshape(B, A, N)


# ----------------------------- init & reference -----------------------------

def _xavier_uniform(key, out_dim, in_dim):
    bound = math.sqrt(6.0 / (in_dim + out_dim))
    # PyTorch layout is [out, in]; transpose to [in, out] for the kernel.
    return jax.random.uniform(key, (out_dim, in_dim), jnp.float32,
                              -bound, bound).T


def _scale_noise(key, size):
    x = jax.random.normal(key, (size,), jnp.float32)
    return jnp.sign(x) * jnp.sqrt(jnp.abs(x))


def init_qnet_params(key, input_nums, output_nums, hidden_nums, sigma, atom_nums):
    keys = jax.random.split(key, 8)
    adv_out = output_nums * atom_nums

    # nn.Linear layers: xavier_uniform_ weight, zero bias
    w1 = _xavier_uniform(keys[0], hidden_nums, input_nums)            # [In, H]
    b1 = jnp.zeros((1, hidden_nums), jnp.float32)
    w2 = _xavier_uniform(keys[1], hidden_nums, hidden_nums)           # [H, H]
    b2 = jnp.zeros((1, hidden_nums), jnp.float32)
    wval = _xavier_uniform(keys[2], atom_nums, hidden_nums)           # [H, N]
    bval = jnp.zeros((1, atom_nums), jnp.float32)

    # NoisyLinear(hidden_nums -> output_nums*atom_nums)
    mu_range = 1.0 / math.sqrt(hidden_nums)
    wadv_mu = jax.random.uniform(keys[3], (adv_out, hidden_nums), jnp.float32,
                                 -mu_range, mu_range).T               # [H, A*N]
    wadv_sigma = jnp.full((hidden_nums, adv_out),
                          sigma / math.sqrt(hidden_nums), jnp.float32)
    badv_mu = jax.random.uniform(keys[4], (1, adv_out), jnp.float32,
                                 -mu_range, mu_range)
    badv_sigma = jnp.full((1, adv_out),
                          sigma / math.sqrt(adv_out), jnp.float32)

    eps_in = _scale_noise(keys[5], hidden_nums)                       # [H]
    eps_out = _scale_noise(keys[6], adv_out)                          # [A*N]
    # PyTorch: weight_epsilon = eps_out.ger(eps_in) -> [A*N, H]; transpose.
    wadv_eps = jnp.outer(eps_out, eps_in).T                           # [H, A*N]
    badv_eps = eps_out[None, :]                                       # [1, A*N]

    return dict(w1=w1, b1=b1, w2=w2, b2=b2,
                wadv_mu=wadv_mu, wadv_sigma=wadv_sigma, wadv_eps=wadv_eps,
                badv_mu=badv_mu, badv_sigma=badv_sigma, badv_eps=badv_eps,
                wval=wval, bval=bval)


def qnet_reference(x, params, output_nums, atom_nums):
    # Pure-JAX reference of the PyTorch forward, for correctness checking.
    h = jnp.maximum(x @ params["w1"] + params["b1"], 0.0)
    h = jnp.maximum(h @ params["w2"] + params["b2"], 0.0)
    w_adv = params["wadv_mu"] + params["wadv_sigma"] * params["wadv_eps"]
    b_adv = params["badv_mu"] + params["badv_sigma"] * params["badv_eps"]
    adv = (h @ w_adv + b_adv).reshape(-1, output_nums, atom_nums)
    val = (h @ params["wval"] + params["bval"]).reshape(-1, 1, atom_nums)
    z = val + adv - adv.mean(axis=1, keepdims=True)
    return jax.nn.softmax(z, axis=2)


if __name__ == "__main__":
    input_nums = 16
    output_nums = 4
    hidden_nums = 32
    sigma = 0.5
    atom_nums = 8
    batch = 16

    key = jax.random.PRNGKey(0)
    k_param, k_x = jax.random.split(key)
    params = init_qnet_params(k_param, input_nums, output_nums, hidden_nums,
                              sigma, atom_nums)
    x = jax.random.normal(k_x, (batch, input_nums), jnp.float32)

    p_ref = qnet_reference(x, params, output_nums, atom_nums)

    # (1) Default path: single full-extent batch block (best for 1-TC chips).
    p = qnet_forward(x, params, output_nums, atom_nums)
    jax.block_until_ready(p)
    assert p.shape == (batch, output_nums, atom_nums)
    assert jnp.allclose(jnp.sum(p, axis=-1), 1.0, atol=1e-5)
    assert jnp.allclose(p, p_ref, atol=1e-5, rtol=1e-5)

    # (2) Streaming path: block_b=8 -> tb=8, grid=(2,), exercises batch tiling
    #     with resident weights (the v7x 2-step sharding shape).
    p2 = qnet_forward(x, params, output_nums, atom_nums, block_b=8)
    jax.block_until_ready(p2)
    assert jnp.allclose(jnp.sum(p2, axis=-1), 1.0, atol=1e-5)
    assert jnp.allclose(p2, p_ref, atol=1e-5, rtol=1e-5)

    print("KERNEL_OK")
</pallas_src>

<mosaic_0001>
module attributes {stable_mosaic.version = 11 : i64} {
  func.func @qnet_kernel(%arg0: i32, %arg1: memref<16x16xf32, #tpu.memory_space<vmem>>, %arg2: memref<16x32xf32, #tpu.memory_space<vmem>>, %arg3: memref<1x32xf32, #tpu.memory_space<vmem>>, %arg4: memref<32x32xf32, #tpu.memory_space<vmem>>, %arg5: memref<1x32xf32, #tpu.memory_space<vmem>>, %arg6: memref<32x32xf32, #tpu.memory_space<vmem>>, %arg7: memref<1x32xf32, #tpu.memory_space<vmem>>, %arg8: memref<32x32xf32, #tpu.memory_space<vmem>>, %arg9: memref<16x32xf32, #tpu.memory_space<vmem>>) attributes {dimension_semantics = [#tpu.dimension_semantics<parallel>], iteration_bounds = array<i64: 1>, scalar_prefetch = 0 : i64, scratch_operands = 0 : i64, tpu.core_type = #tpu.core_type<tc>, window_params = [{transform_indices = @transform_0, window_bounds = array<i64: 16, 16>}, {pipeline_mode = #tpu.pipeline_mode<synchronous>, transform_indices = @transform_1, window_bounds = array<i64: 16, 32>}, {pipeline_mode = #tpu.pipeline_mode<synchronous>, transform_indices = @transform_2, window_bounds = array<i64: 1, 32>}, {pipeline_mode = #tpu.pipeline_mode<synchronous>, transform_indices = @transform_3, window_bounds = array<i64: 32, 32>}, {pipeline_mode = #tpu.pipeline_mode<synchronous>, transform_indices = @transform_4, window_bounds = array<i64: 1, 32>}, {pipeline_mode = #tpu.pipeline_mode<synchronous>, transform_indices = @transform_5, window_bounds = array<i64: 32, 32>}, {pipeline_mode = #tpu.pipeline_mode<synchronous>, transform_indices = @transform_6, window_bounds = array<i64: 1, 32>}, {pipeline_mode = #tpu.pipeline_mode<synchronous>, transform_indices = @transform_7, window_bounds = array<i64: 32, 32>}, {transform_indices = @transform_8, window_bounds = array<i64: 16, 32>}]} {
    %c0 = arith.constant 0 : index
    %c0_0 = arith.constant 0 : index
    %0 = vector.load %arg1[%c0, %c0_0] : memref<16x16xf32, #tpu.memory_space<vmem>>, vector<16x16xf32>
    %c0_1 = arith.constant 0 : index
    %c0_2 = arith.constant 0 : index
    %1 = vector.load %arg2[%c0_1, %c0_2] : memref<16x32xf32, #tpu.memory_space<vmem>>, vector<16x32xf32>
    %cst = arith.constant dense<0.000000e+00> : vector<16x32xf32>
    %2 = tpu.matmul %0, %1, %cst {dimension_numbers = #tpu.dot_dimension_numbers<[1], [0], [0], [1], [0, 0, 1, 1], [], []>} : vector<16x16xf32>, vector<16x32xf32>, vector<16x32xf32> -> vector<16x32xf32>
    %c0_3 = arith.constant 0 : index
    %c0_4 = arith.constant 0 : index
    %3 = vector.load %arg3[%c0_3, %c0_4] : memref<1x32xf32, #tpu.memory_space<vmem>>, vector<1x32xf32>
    %4 = vector.broadcast %3 : vector<1x32xf32> to vector<16x32xf32>
    %5 = arith.addf %2, %4 : vector<16x32xf32>
    %cst_5 = arith.constant 0.000000e+00 : f32
    %6 = vector.broadcast %cst_5 : f32 to vector<16x32xf32>
    %7 = arith.maximumf %5, %6 : vector<16x32xf32>
    %c0_6 = arith.constant 0 : index
    %c0_7 = arith.constant 0 : index
    %8 = vector.load %arg4[%c0_6, %c0_7] : memref<32x32xf32, #tpu.memory_space<vmem>>, vector<32x32xf32>
    %cst_8 = arith.constant dense<0.000000e+00> : vector<16x32xf32>
    %9 = tpu.matmul %7, %8, %cst_8 {dimension_numbers = #tpu.dot_dimension_numbers<[1], [0], [0], [1], [0, 0, 1, 1], [], []>} : vector<16x32xf32>, vector<32x32xf32>, vector<16x32xf32> -> vector<16x32xf32>
    %c0_9 = arith.constant 0 : index
    %c0_10 = arith.constant 0 : index
    %10 = vector.load %arg5[%c0_9, %c0_10] : memref<1x32xf32, #tpu.memory_space<vmem>>, vector<1x32xf32>
    %11 = vector.broadcast %10 : vector<1x32xf32> to vector<16x32xf32>
    %12 = arith.addf %9, %11 : vector<16x32xf32>
    %cst_11 = arith.constant 0.000000e+00 : f32
    %13 = vector.broadcast %cst_11 : f32 to vector<16x32xf32>
    %14 = arith.maximumf %12, %13 : vector<16x32xf32>
    %c0_12 = arith.constant 0 : index
    %c0_13 = arith.constant 0 : index
    %15 = vector.load %arg6[%c0_12, %c0_13] : memref<32x32xf32, #tpu.memory_space<vmem>>, vector<32x32xf32>
    %cst_14 = arith.constant dense<0.000000e+00> : vector<16x32xf32>
    %16 = tpu.matmul %14, %15, %cst_14 {dimension_numbers = #tpu.dot_dimension_numbers<[1], [0], [0], [1], [0, 0, 1, 1], [], []>} : vector<16x32xf32>, vector<32x32xf32>, vector<16x32xf32> -> vector<16x32xf32>
    %c0_15 = arith.constant 0 : index
    %c0_16 = arith.constant 0 : index
    %17 = vector.load %arg7[%c0_15, %c0_16] : memref<1x32xf32, #tpu.memory_space<vmem>>, vector<1x32xf32>
    %18 = vector.broadcast %17 : vector<1x32xf32> to vector<16x32xf32>
    %19 = arith.addf %16, %18 : vector<16x32xf32>
    %20 = vector.extract_strided_slice %19 {offsets = [0, 0], sizes = [16, 8], strides = [1, 1]} : vector<16x32xf32> to vector<16x8xf32>
    %cst_17 = arith.constant dense<0xFF800000> : vector<16xf32>
    %21 = vector.multi_reduction <maximumf>, %20, %cst_17 [1] : vector<16x8xf32> to vector<16xf32>
    %22 = vector.shape_cast %21 : vector<16xf32> to vector<16x1xf32>
    %23 = vector.broadcast %22 : vector<16x1xf32> to vector<16x8xf32>
    %24 = arith.subf %20, %23 : vector<16x8xf32>
    %25 = vector.extract_strided_slice %19 {offsets = [0, 8], sizes = [16, 8], strides = [1, 1]} : vector<16x32xf32> to vector<16x8xf32>
    %cst_18 = arith.constant dense<0xFF800000> : vector<16xf32>
    %26 = vector.multi_reduction <maximumf>, %25, %cst_18 [1] : vector<16x8xf32> to vector<16xf32>
    %27 = vector.shape_cast %26 : vector<16xf32> to vector<16x1xf32>
    %28 = vector.broadcast %27 : vector<16x1xf32> to vector<16x8xf32>
    %29 = arith.subf %25, %28 : vector<16x8xf32>
    %30 = vector.extract_strided_slice %19 {offsets = [0, 16], sizes = [16, 8], strides = [1, 1]} : vector<16x32xf32> to vector<16x8xf32>
    %cst_19 = arith.constant dense<0xFF800000> : vector<16xf32>
    %31 = vector.multi_reduction <maximumf>, %30, %cst_19 [1] : vector<16x8xf32> to vector<16xf32>
    %32 = vector.shape_cast %31 : vector<16xf32> to vector<16x1xf32>
    %33 = vector.broadcast %32 : vector<16x1xf32> to vector<16x8xf32>
    %34 = arith.subf %30, %33 : vector<16x8xf32>
    %35 = vector.extract_strided_slice %19 {offsets = [0, 24], sizes = [16, 8], strides = [1, 1]} : vector<16x32xf32> to vector<16x8xf32>
    %cst_20 = arith.constant dense<0xFF800000> : vector<16xf32>
    %36 = vector.multi_reduction <maximumf>, %35, %cst_20 [1] : vector<16x8xf32> to vector<16xf32>
    %37 = vector.shape_cast %36 : vector<16xf32> to vector<16x1xf32>
    %38 = vector.broadcast %37 : vector<16x1xf32> to vector<16x8xf32>
    %39 = arith.subf %35, %38 : vector<16x8xf32>
    %40 = tpu.concatenate %24, %29, %34, %39 in 1 : vector<16x8xf32>, vector<16x8xf32>, vector<16x8xf32>, vector<16x8xf32> -> vector<16x32xf32>
    %41 = math.exp %40 : vector<16x32xf32>
    %c0_21 = arith.constant 0 : index
    %c0_22 = arith.constant 0 : index
    %42 = vector.load %arg8[%c0_21, %c0_22] : memref<32x32xf32, #tpu.memory_space<vmem>>, vector<32x32xf32>
    %cst_23 = arith.constant dense<0.000000e+00> : vector<16x32xf32>
    %43 = tpu.matmul %41, %42, %cst_23 {dimension_numbers = #tpu.dot_dimension_numbers<[1], [0], [0], [1], [0, 0, 1, 1], [], []>} : vector<16x32xf32>, vector<32x32xf32>, vector<16x32xf32> -> vector<16x32xf32>
    %44 = tpu.reciprocal %43 : vector<16x32xf32> -> vector<16x32xf32>
    %45 = arith.mulf %41, %44 : vector<16x32xf32>
    %c0_24 = arith.constant 0 : index
    %c0_25 = arith.constant 0 : index
    %46 = vector.load %arg9[%c0_24, %c0_25] : memref<16x32xf32, #tpu.memory_space<vmem>>, vector<16x32xf32>
    tpu.vector_store %arg9[%c0_24, %c0_25], %45 {strides = array<i32>} : memref<16x32xf32, #tpu.memory_space<vmem>>, vector<16x32xf32>,
    return
  }
  func.func @transform_0(%arg0: i32) -> (i32, i32) {
    %c0_i32 = arith.constant 0 : i32
    %c0_i32_0 = arith.constant 0 : i32
    return %arg0, %c0_i32 : i32, i32
  }
  func.func @transform_1(%arg0: i32) -> (i32, i32) {
    %c0_i32 = arith.constant 0 : i32
    %c0_i32_0 = arith.constant 0 : i32
    %c0_i32_1 = arith.constant 0 : i32
    return %c0_i32, %c0_i32_0 : i32, i32
  }
  func.func @transform_2(%arg0: i32) -> (i32, i32) {
    %c0_i32 = arith.constant 0 : i32
    %c0_i32_0 = arith.constant 0 : i32
    %c0_i32_1 = arith.constant 0 : i32
    return %c0_i32, %c0_i32_0 : i32, i32
  }
  func.func @transform_3(%arg0: i32) -> (i32, i32) {
    %c0_i32 = arith.constant 0 : i32
    %c0_i32_0 = arith.constant 0 : i32
    %c0_i32_1 = arith.constant 0 : i32
    return %c0_i32, %c0_i32_0 : i32, i32
  }
  func.func @transform_4(%arg0: i32) -> (i32, i32) {
    %c0_i32 = arith.constant 0 : i32
    %c0_i32_0 = arith.constant 0 : i32
    %c0_i32_1 = arith.constant 0 : i32
    return %c0_i32, %c0_i32_0 : i32, i32
  }
  func.func @transform_5(%arg0: i32) -> (i32, i32) {
    %c0_i32 = arith.constant 0 : i32
    %c0_i32_0 = arith.constant 0 : i32
    %c0_i32_1 = arith.constant 0 : i32
    return %c0_i32, %c0_i32_0 : i32, i32
  }
  func.func @transform_6(%arg0: i32) -> (i32, i32) {
    %c0_i32 = arith.constant 0 : i32
    %c0_i32_0 = arith.constant 0 : i32
    %c0_i32_1 = arith.constant 0 : i32
    return %c0_i32, %c0_i32_0 : i32, i32
  }
  func.func @transform_7(%arg0: i32) -> (i32, i32) {
    %c0_i32 = arith.constant 0 : i32
    %c0_i32_0 = arith.constant 0 : i32
    %c0_i32_1 = arith.constant 0 : i32
    return %c0_i32, %c0_i32_0 : i32, i32
  }
  func.func @transform_8(%arg0: i32) -> (i32, i32) {
    %c0_i32 = arith.constant 0 : i32
    %c0_i32_0 = arith.constant 0 : i32
    return %arg0, %c0_i32 : i32, i32
  }
}

</mosaic_0001>

<llo_original>
// kernel: tpu_custom_call.1
$region0: #{tpu_custom_call.1}
  #allocation0 [shape = 'u32[]', space=smem, size = 0x4, offset = 0x4, fixed_abs, tag = 'smem constant byte address 0x4 - core index']
  #allocation1 [shape = 'u32[144,128]{1,0:T(1,128)}', space=vmem, size = 0x12000, scoped, tag = 'internal scratch']
  %s0 = inlined_call_operand.hbm [shape: f32[16,16], index: 0, kind: input, shape index: {}]
  %s1 = inlined_call_operand.hbm [shape: f32[16,32], index: 1, kind: input, shape index: {}]
  %s2 = inlined_call_operand.vmem [shape: f32[1,32], index: 2, kind: input, shape index: {}]
  %s3 = inlined_call_operand.hbm [shape: f32[32,32], index: 3, kind: input, shape index: {}]
  %s4 = inlined_call_operand.vmem [shape: f32[1,32], index: 4, kind: input, shape index: {}]
  %s5 = inlined_call_operand.hbm [shape: f32[32,32], index: 5, kind: input, shape index: {}]
  %s6 = inlined_call_operand.vmem [shape: f32[1,32], index: 6, kind: input, shape index: {}]
  %s7 = inlined_call_operand.hbm [shape: f32[32,32], index: 7, kind: input, shape index: {}]
  %s8 = inlined_call_operand.hbm [shape: f32[16,32], index: 8, kind: output, shape index: {}]
  %s9 = sld [smem:[#allocation0]]
  $region62: #{tpu_custom_call.1} parent=0
    _
  %s11 = ssub.s32 1, %s9
  %s12 = scalar_select 0, %s11, %s9
  $region1: #{tpu_custom_call.1} parent=0
    #allocation2 [shape = 'u8[8192]{0}', space=vmem, size = 0x2000, scoped, tag = 'input window, operand 0, single buffered']
    #allocation3 [shape = 's32[1]{0}', space=sflag, size = 0x4, scoped, tag = 'scoped memory for tpu_custom_call.1']
    #allocation4 [shape = 's32[1]{0}', space=sflag, size = 0x4, scoped, tag = 'scoped memory for tpu_custom_call.1']
    #allocation5 [shape = 'u8[8192]{0}', space=vmem, size = 0x2000, scoped, tag = 'input window, operand 1, single buffered']
    #allocation6 [shape = 's32[1]{0}', space=sflag, size = 0x4, scoped, tag = 'scoped memory for tpu_custom_call.1']
    #allocation7 [shape = 'u8[16384]{0}', space=vmem, size = 0x4000, scoped, tag = 'input window, operand 3, single buffered']
    #allocation8 [shape = 'u8[16384]{0}', space=vmem, size = 0x4000, scoped, tag = 'input window, operand 5, single buffered']
    #allocation9 [shape = 's32[1]{0}', space=sflag, size = 0x4, scoped, tag = 'scoped memory for tpu_custom_call.1']
    #allocation10 [shape = 'u8[16384]{0}', space=vmem, size = 0x4000, scoped, tag = 'input window, operand 7, single buffered']
    #allocation11 [shape = 'u8[8192]{0}', space=vmem, size = 0x2000, scoped, tag = 'output window, operand 0, single buffered']
    %13 = vsyncpa [#allocation3], 0
    %14 = vsyncpa [#allocation6], 0
    %15 = vsyncpa [#allocation9], 0
    %16 = vsyncpa [#allocation4], 0
    // Predicated region
    $region2: #{tpu_custom_call.1} parent=1 // pred_check
      _
    $region3: #{tpu_custom_call.1} parent=1 // pred_check_branch
      %18 = sbr.rel (0) target = $region5
    $region4: #{tpu_custom_call.1} parent=1 // pred_region
      %s20 = ssub.s32 256, 256
      %21 = vsyncadd [#allocation3], %s20
      %s22 = sshll.u32 [#allocation2], 4
      %s23 = int_to_ptr.vmem [resolvable:$true] %s22
      %28 = dma.hbm_to_vmem [thread:$0]  %s0, 256, %s23, [#allocation3], 128, 128, 8
    $region5: #{tpu_custom_call.1} parent=1 // pred_fallthru
      _
    // Predicated region
    $region6: #{tpu_custom_call.1} parent=1 // pred_check
      _
    $region7: #{tpu_custom_call.1} parent=1 // pred_check_branch
      %30 = sbr.rel (0) target = $region9
    $region8: #{tpu_custom_call.1} parent=1 // pred_region
      %s32 = ssub.s32 256, 256
      %33 = vsyncadd [#allocation6], %s32
      %s34 = sshll.u32 [#allocation5], 4
      %s35 = int_to_ptr.vmem [resolvable:$true] %s34
      %40 = dma.hbm_to_vmem [thread:$0]  %s1, 256, %s35, [#allocation6], 128, 128, 8
    $region9: #{tpu_custom_call.1} parent=1 // pred_fallthru
      _
    // Predicated region
    $region10: #{tpu_custom_call.1} parent=1 // pred_check
      _
    $region11: #{tpu_custom_call.1} parent=1 // pred_check_branch
      %42 = sbr.rel (0) target = $region13
    $region12: #{tpu_custom_call.1} parent=1 // pred_region
      _
    $region13: #{tpu_custom_call.1} parent=1 // pred_fallthru
      _
    // Predicated region
    $region14: #{tpu_custom_call.1} parent=1 // pred_check
      _
    $region15: #{tpu_custom_call.1} parent=1 // pred_check_branch
      %44 = sbr.rel (0) target = $region17
    $region16: #{tpu_custom_call.1} parent=1 // pred_region
      %s46 = ssub.s32 512, 512
      %47 = vsyncadd [#allocation6], %s46
      %s48 = sshll.u32 [#allocation7], 4
      %s49 = int_to_ptr.vmem [resolvable:$true] %s48
      %54 = dma.hbm_to_vmem [thread:$0]  %s3, 512, %s49, [#allocation6], 128, 128, 8
    $region17: #{tpu_custom_call.1} parent=1 // pred_fallthru
      _
    // Predicated region
    $region18: #{tpu_custom_call.1} parent=1 // pred_check
      _
    $region19: #{tpu_custom_call.1} parent=1 // pred_check_branch
      %56 = sbr.rel (0) target = $region21
    $region20: #{tpu_custom_call.1} parent=1 // pred_region
      _
    $region21: #{tpu_custom_call.1} parent=1 // pred_fallthru
      _
    // Predicated region
    $region22: #{tpu_custom_call.1} parent=1 // pred_check
      _
    $region23: #{tpu_custom_call.1} parent=1 // pred_check_branch
      %58 = sbr.rel (0) target = $region25
    $region24: #{tpu_custom_call.1} parent=1 // pred_region
      %s60 = ssub.s32 512, 512
      %61 = vsyncadd [#allocation9], %s60
      %s62 = sshll.u32 [#allocation8], 4
      %s63 = int_to_ptr.vmem [resolvable:$true] %s62
      %68 = dma.hbm_to_vmem [thread:$0]  %s5, 512, %s63, [#allocation9], 128, 128, 8
    $region25: #{tpu_custom_call.1} parent=1 // pred_fallthru
      _
    // Predicated region
    $region26: #{tpu_custom_call.1} parent=1 // pred_check
      _
    $region27: #{tpu_custom_call.1} parent=1 // pred_check_branch
      %70 = sbr.rel (0) target = $region29
    $region28: #{tpu_custom_call.1} parent=1 // pred_region
      _
    $region29: #{tpu_custom_call.1} parent=1 // pred_fallthru
      _
    // Predicated region
    $region30: #{tpu_custom_call.1} parent=1 // pred_check
      _
    $region31: #{tpu_custom_call.1} parent=1 // pred_check_branch
      %72 = sbr.rel (0) target = $region33
    $region32: #{tpu_custom_call.1} parent=1 // pred_region
      %s74 = ssub.s32 512, 512
      %75 = vsyncadd [#allocation9], %s74
      %s76 = sshll.u32 [#allocation10], 4
      %s77 = int_to_ptr.vmem [resolvable:$true] %s76
      %82 = dma.hbm_to_vmem [thread:$0]  %s7, 512, %s77, [#allocation9], 128, 128, 8
    $region33: #{tpu_custom_call.1} parent=1 // pred_fallthru
      _
    // Predicated region
    $region34: #{tpu_custom_call.1} parent=1 // pred_check
      _
    $region35: #{tpu_custom_call.1} parent=1 // pred_check_branch
      %84 = sbr.rel (0) target = $region37
    $region36: #{tpu_custom_call.1} parent=1 // pred_region
      %85 = dma.done [#allocation3], 256
    $region37: #{tpu_custom_call.1} parent=1 // pred_fallthru
      _
    // Predicated region
    $region38: #{tpu_custom_call.1} parent=1 // pred_check
      _
    $region39: #{tpu_custom_call.1} parent=1 // pred_check_branch
      %87 = sbr.rel (0) target = $region41
    $region40: #{tpu_custom_call.1} parent=1 // pred_region
      %88 = dma.done [#allocation6], 256
    $region41: #{tpu_custom_call.1} parent=1 // pred_fallthru
      _
    // Predicated region
    $region42: #{tpu_custom_call.1} parent=1 // pred_check
      _
    $region43: #{tpu_custom_call.1} parent=1 // pred_check_branch
      %90 = sbr.rel (0) target = $region45
    $region44: #{tpu_custom_call.1} parent=1 // pred_region
      %91 = dma.done [#allocation6], 512
    $region45: #{tpu_custom_call.1} parent=1 // pred_fallthru
      _
    // Predicated region
    $region46: #{tpu_custom_call.1} parent=1 // pred_check
      _
    $region47: #{tpu_custom_call.1} parent=1 // pred_check_branch
      %93 = sbr.rel (0) target = $region49
    $region48: #{tpu_custom_call.1} parent=1 // pred_region
      %94 = dma.done [#allocation9], 512
    $region49: #{tpu_custom_call.1} parent=1 // pred_fallthru
      _
    // Predicated region
    $region50: #{tpu_custom_call.1} parent=1 // pred_check
      _
    $region51: #{tpu_custom_call.1} parent=1 // pred_check_branch
      %96 = sbr.rel (0) target = $region53
    $region52: #{tpu_custom_call.1} parent=1 // pred_region
      %97 = dma.done [#allocation9], 512
    $region53: #{tpu_custom_call.1} parent=1 // pred_fallthru
      _
    %v98 = vld [vmem:[#allocation2] sm:$0xff]
    %v99 = vld [vmem:[#allocation2 + $0x8] sm:$0xff]
    %v100 = vld [vmem:[#allocation5] sm:$0xff]
    %v101 = vld [vmem:[#allocation5 + $0x8] sm:$0xff]
    %v102 = vld [vmem:[%s2] sm:$0x1]
    %v104 = vlaneseq
    %v105 = vshrl.u32 %v104, 7
    %v106 = vsub.s32 0, %v105
    %v107 = vrot.slane %v102, %v106
    %vm109 = vcmask 130048
    %v111 = vsel %vm109, %v98, 0
    %v114 = vsel %vm109, %v99, 0
    %116 = vmatprep.subr.mxu0 0.0
    %117 = vmatpush1.msra.mxu0 %v100
    %118 = vmatprep.subr.mxu0 0.0
    %119 = vmatpush1.msra.mxu0 %v101
    %120 = vmatprep.subr.mxu0 0.0
    %121 = vmatpush1.msra.mxu0 0.0
    %122 = vmatprep.subr.mxu0 0.0
    %123 = vmatpush1.msra.mxu0 0.0
    %124 = vmatprep.subr.mxu0 0.0
    %125 = vmatpush1.msra.mxu0 0.0
    %126 = vmatprep.subr.mxu0 0.0
    %127 = vmatpush1.msra.mxu0 0.0
    %128 = vmatprep.subr.mxu0 0.0
    %129 = vmatpush1.msra.mxu0 0.0
    %130 = vmatprep.subr.mxu0 0.0
    %131 = vmatpush1.msra.mxu0 0.0
    %132 = vmatprep.subr.mxu0 0.0
    %133 = vmatpush1.msra.mxu0 0.0
    %134 = vmatprep.subr.mxu0 0.0
    %135 = vmatpush1.msra.mxu0 0.0
    %136 = vmatprep.subr.mxu0 0.0
    %137 = vmatpush1.msra.mxu0 0.0
    %138 = vmatprep.subr.mxu0 0.0
    %139 = vmatpush1.msra.mxu0 0.0
    %140 = vmatprep.subr.mxu0 0.0
    %141 = vmatpush1.msra.mxu0 0.0
    %142 = vmatprep.subr.mxu0 0.0
    %143 = vmatpush1.msra.mxu0 0.0
    %144 = vmatprep.subr.mxu0 0.0
    %145 = vmatpush1.msra.mxu0 0.0
    %146 = vmatprep.subr.mxu0 0.0
    %147 = vmatpush1.msra.mxu0 0.0
    %148 = vmatprep.subr.mxu0 0.0
    %149 = vmatpush1.msra.mxu0 0.0
    %150 = vmatprep.subr.mxu0 0.0
    %151 = vmatpush1.msra.mxu0 0.0
    %152 = vmatprep.subr.mxu0 0.0
    %153 = vmatpush1.msra.mxu0 0.0
    %154 = vmatprep.subr.mxu0 0.0
    %155 = vmatpush1.msra.mxu0 0.0
    %156 = vmatprep.subr.mxu0 0.0
    %157 = vmatpush1.msra.mxu0 0.0
    %158 = vmatprep.subr.mxu0 0.0
    %159 = vmatpush1.msra.mxu0 0.0
    %160 = vmatprep.subr.mxu0 0.0
    %161 = vmatpush1.msra.mxu0 0.0
    %162 = vmatprep.subr.mxu0 0.0
    %163 = vmatpush1.msra.mxu0 0.0
    %164 = vmatprep.subr.mxu0 0.0
    %165 = vmatpush1.msra.mxu0 0.0
    %166 = vmatprep.subr.mxu0 0.0
    %167 = vmatpush1.msra.mxu0 0.0
    %168 = vmatprep.subr.mxu0 0.0
    %169 = vmatpush1.msra.mxu0 0.0
    %170 = vmatprep.subr.mxu0 0.0
    %171 = vmatpush1.msra.mxu0 0.0
    %172 = vmatprep.subr.mxu0 0.0
    %173 = vmatpush1.msra.mxu0 0.0
    %174 = vmatprep.subr.mxu0 0.0
    %175 = vmatpush1.msra.mxu0 0.0
    %176 = vmatprep.subr.mxu0 0.0
    %177 = vmatpush1.msra.mxu0 0.0
    %178 = vmatprep.subr.mxu0 0.0
    %179 = vmatpush1.msra.mxu0 0.0
    %180 = vmatprep.mubr.f32.mxu0 0.0
    %181 = vmatmul.mubr.f32.gmra.mrb[0].mxu0 %v111
    %v182 = vpop.f32.mrb[0].mxu0
    %v183 = vadd.f32 %v107, %v182
    %v184 = vpop.f32.mrb[0].mxu0
    %185 = vmatprep.mubr.f32.mxu0 0.0
    %186 = vmatmul.mubr.f32.gmra.mrb[0].mxu0 %v114
    %v187 = vpop.f32.mrb[0].mxu0
    %v188 = vadd.f32 %v107, %v187
    %v189 = vpop.f32.mrb[0].mxu0
    %190 = vdwg.mxu0
    %v191 = vmax.f32 %v183, 0.0
    %v192 = vmax.f32 %v188, 0.0
    %v193 = vld [vmem:[#allocation7] sm:$0xff]
    %v194 = vld [vmem:[#allocation7 + $0x8] sm:$0xff]
    %v195 = vld [vmem:[#allocation7 + $0x10] sm:$0xff]
    %v196 = vld [vmem:[#allocation7 + $0x18] sm:$0xff]
    %v197 = vld [vmem:[%s4] sm:$0x1]
    %v199 = vlaneseq
    %v200 = vshrl.u32 %v199, 7
    %v201 = vsub.s32 0, %v200
    %v202 = vrot.slane %v197, %v201
    %vm204 = vcmask 261120
    %v206 = vsel %vm204, %v191, 0
    %v209 = vsel %vm204, %v192, 0
    %211 = vmatprep.subr.mxu0 0.0
    %212 = vmatpush1.msra.mxu0 %v193
    %213 = vmatprep.subr.mxu0 0.0
    %214 = vmatpush1.msra.mxu0 %v194
    %215 = vmatprep.subr.mxu0 0.0
    %216 = vmatpush1.msra.mxu0 %v195
    %217 = vmatprep.subr.mxu0 0.0
    %218 = vmatpush1.msra.mxu0 %v196
    %219 = vmatprep.subr.mxu0 0.0
    %220 = vmatpush1.msra.mxu0 0.0
    %221 = vmatprep.subr.mxu0 0.0
    %222 = vmatpush1.msra.mxu0 0.0
    %223 = vmatprep.subr.mxu0 0.0
    %224 = vmatpush1.msra.mxu0 0.0
    %225 = vmatprep.subr.mxu0 0.0
    %226 = vmatpush1.msra.mxu0 0.0
    %227 = vmatprep.subr.mxu0 0.0
    %228 = vmatpush1.msra.mxu0 0.0
    %229 = vmatprep.subr.mxu0 0.0
    %230 = vmatpush1.msra.mxu0 0.0
    %231 = vmatprep.subr.mxu0 0.0
    %232 = vmatpush1.msra.mxu0 0.0
    %233 = vmatprep.subr.mxu0 0.0
    %234 = vmatpush1.msra.mxu0 0.0
    %235 = vmatprep.subr.mxu0 0.0
    %236 = vmatpush1.msra.mxu0 0.0
    %237 = vmatprep.subr.mxu0 0.0
    %238 = vmatpush1.msra.mxu0 0.0
    %239 = vmatprep.subr.mxu0 0.0
    %240 = vmatpush1.msra.mxu0 0.0
    %241 = vmatprep.subr.mxu0 0.0
    %242 = vmatpush1.msra.mxu0 0.0
    %243 = vmatprep.subr.mxu0 0.0
    %244 = vmatpush1.msra.mxu0 0.0
    %245 = vmatprep.subr.mxu0 0.0
    %246 = vmatpush1.msra.mxu0 0.0
    %247 = vmatprep.subr.mxu0 0.0
    %248 = vmatpush1.msra.mxu0 0.0
    %249 = vmatprep.subr.mxu0 0.0
    %250 = vmatpush1.msra.mxu0 0.0
    %251 = vmatprep.subr.mxu0 0.0
    %252 = vmatpush1.msra.mxu0 0.0
    %253 = vmatprep.subr.mxu0 0.0
    %254 = vmatpush1.msra.mxu0 0.0
    %255 = vmatprep.subr.mxu0 0.0
    %256 = vmatpush1.msra.mxu0 0.0
    %257 = vmatprep.subr.mxu0 0.0
    %258 = vmatpush1.msra.mxu0 0.0
    %259 = vmatprep.subr.mxu0 0.0
    %260 = vmatpush1.msra.mxu0 0.0
    %261 = vmatprep.subr.mxu0 0.0
    %262 = vmatpush1.msra.mxu0 0.0
    %263 = vmatprep.subr.mxu0 0.0
    %264 = vmatpush1.msra.mxu0 0.0
    %265 = vmatprep.subr.mxu0 0.0
    %266 = vmatpush1.msra.mxu0 0.0
    %267 = vmatprep.subr.mxu0 0.0
    %268 = vmatpush1.msra.mxu0 0.0
    %269 = vmatprep.subr.mxu0 0.0
    %270 = vmatpush1.msra.mxu0 0.0
    %271 = vmatprep.subr.mxu0 0.0
    %272 = vmatpush1.msra.mxu0 0.0
    %273 = vmatprep.subr.mxu0 0.0
    %274 = vmatpush1.msra.mxu0 0.0
    %275 = vmatprep.mubr.f32.mxu0 0.0
    %276 = vmatmul.mubr.f32.gmra.mrb[0].mxu0 %v206
    %v277 = vpop.f32.mrb[0].mxu0
    %v278 = vadd.f32 %v202, %v277
    %v279 = vpop.f32.mrb[0].mxu0
    %280 = vmatprep.mubr.f32.mxu0 0.0
    %281 = vmatmul.mubr.f32.gmra.mrb[0].mxu0 %v209
    %v282 = vpop.f32.mrb[0].mxu0
    %v283 = vadd.f32 %v202, %v282
    %v284 = vpop.f32.mrb[0].mxu0
    %285 = vdwg.mxu0
    %v286 = vmax.f32 %v278, 0.0
    %v287 = vmax.f32 %v283, 0.0
    %v288 = vld [vmem:[#allocation8] sm:$0xff]
    %v289 = vld [vmem:[#allocation8 + $0x8] sm:$0xff]
    %v290 = vld [vmem:[#allocation8 + $0x10] sm:$0xff]
    %v291 = vld [vmem:[#allocation8 + $0x18] sm:$0xff]
    %v292 = vld [vmem:[%s6] sm:$0x1]
    %v294 = vlaneseq
    %v295 = vshrl.u32 %v294, 7
    %v296 = vsub.s32 0, %v295
    %v297 = vrot.slane %v292, %v296
    %v300 = vsel %vm204, %v286, 0
    %v303 = vsel %vm204, %v287, 0
    %305 = vmatprep.subr.mxu0 0.0
    %306 = vmatpush1.msra.mxu0 %v288
    %307 = vmatprep.subr.mxu0 0.0
    %308 = vmatpush1.msra.mxu0 %v289
    %309 = vmatprep.subr.mxu0 0.0
    %310 = vmatpush1.msra.mxu0 %v290
    %311 = vmatprep.subr.mxu0 0.0
    %312 = vmatpush1.msra.mxu0 %v291
    %313 = vmatprep.subr.mxu0 0.0
    %314 = vmatpush1.msra.mxu0 0.0
    %315 = vmatprep.subr.mxu0 0.0
    %316 = vmatpush1.msra.mxu0 0.0
    %317 = vmatprep.subr.mxu0 0.0
    %318 = vmatpush1.msra.mxu0 0.0
    %319 = vmatprep.subr.mxu0 0.0
    %320 = vmatpush1.msra.mxu0 0.0
    %321 = vmatprep.subr.mxu0 0.0
    %322 = vmatpush1.msra.mxu0 0.0
    %323 = vmatprep.subr.mxu0 0.0
    %324 = vmatpush1.msra.mxu0 0.0
    %325 = vmatprep.subr.mxu0 0.0
    %326 = vmatpush1.msra.mxu0 0.0
    %327 = vmatprep.subr.mxu0 0.0
    %328 = vmatpush1.msra.mxu0 0.0
    %329 = vmatprep.subr.mxu0 0.0
    %330 = vmatpush1.msra.mxu0 0.0
    %331 = vmatprep.subr.mxu0 0.0
    %332 = vmatpush1.msra.mxu0 0.0
    %333 = vmatprep.subr.mxu0 0.0
    %334 = vmatpush1.msra.mxu0 0.0
    %335 = vmatprep.subr.mxu0 0.0
    %336 = vmatpush1.msra.mxu0 0.0
    %337 = vmatprep.subr.mxu0 0.0
    %338 = vmatpush1.msra.mxu0 0.0
    %339 = vmatprep.subr.mxu0 0.0
    %340 = vmatpush1.msra.mxu0 0.0
    %341 = vmatprep.subr.mxu0 0.0
    %342 = vmatpush1.msra.mxu0 0.0
    %343 = vmatprep.subr.mxu0 0.0
    %344 = vmatpush1.msra.mxu0 0.0
    %345 = vmatprep.subr.mxu0 0.0
    %346 = vmatpush1.msra.mxu0 0.0
    %347 = vmatprep.subr.mxu0 0.0
    %348 = vmatpush1.msra.mxu0 0.0
    %349 = vmatprep.subr.mxu0 0.0
    %350 = vmatpush1.msra.mxu0 0.0
    %351 = vmatprep.subr.mxu0 0.0
    %352 = vmatpush1.msra.mxu0 0.0
    %353 = vmatprep.subr.mxu0 0.0
    %354 = vmatpush1.msra.mxu0 0.0
    %355 = vmatprep.subr.mxu0 0.0
    %356 = vmatpush1.msra.mxu0 0.0
    %357 = vmatprep.subr.mxu0 0.0
    %358 = vmatpush1.msra.mxu0 0.0
    %359 = vmatprep.subr.mxu0 0.0
    %360 = vmatpush1.msra.mxu0 0.0
    %361 = vmatprep.subr.mxu0 0.0
    %362 = vmatpush1.msra.mxu0 0.0
    %363 = vmatprep.subr.mxu0 0.0
    %364 = vmatpush1.msra.mxu0 0.0
    %365 = vmatprep.subr.mxu0 0.0
    %366 = vmatpush1.msra.mxu0 0.0
    %367 = vmatprep.subr.mxu0 0.0
    %368 = vmatpush1.msra.mxu0 0.0
    %369 = vmatprep.mubr.f32.mxu0 0.0
    %370 = vmatmul.mubr.f32.gmra.mrb[0].mxu0 %v300
    %v371 = vpop.f32.mrb[0].mxu0
    %v372 = vadd.f32 %v297, %v371
    %v373 = vpop.f32.mrb[0].mxu0
    %374 = vmatprep.mubr.f32.mxu0 0.0
    %375 = vmatmul.mubr.f32.gmra.mrb[0].mxu0 %v303
    %v376 = vpop.f32.mrb[0].mxu0
    %v377 = vadd.f32 %v297, %v376
    %v378 = vpop.f32.mrb[0].mxu0
    %379 = vdwg.mxu0
    %vm380 = vcmask 64512
    %v381 = vsel %vm380, %v372, -inf
    %382 = vmax.xlane.f32.xlu0 %v381
    %v383 = vpop.xlane.xlu0 %382
    %v384 = vsel %vm380, %v377, -inf
    %385 = vmax.xlane.f32.xlu0 %v384
    %v386 = vpop.xlane.xlu0 %385
    %v387 = vsub.f32 %v372, %v383
    %v388 = vsub.f32 %v377, %v386
    %vm389 = vcmask 130112
    %v390 = vsel %vm389, %v372, -inf
    %391 = vmax.xlane.f32.xlu0 %v390
    %v392 = vpop.xlane.xlu0 %391
    %v393 = vsel %vm389, %v377, -inf
    %394 = vmax.xlane.f32.xlu0 %v393
    %v395 = vpop.xlane.xlu0 %394
    %v396 = vsub.f32 %v372, %v392
    %v397 = vsub.f32 %v377, %v395
    %vm398 = vcmask 195712
    %v399 = vsel %vm398, %v372, -inf
    %400 = vmax.xlane.f32.xlu0 %v399
    %v401 = vpop.xlane.xlu0 %400
    %v402 = vsel %vm398, %v377, -inf
    %403 = vmax.xlane.f32.xlu0 %v402
    %v404 = vpop.xlane.xlu0 %403
    %v405 = vsub.f32 %v372, %v401
    %v406 = vsub.f32 %v377, %v404
    %vm407 = vcmask 261312
    %v408 = vsel %vm407, %v372, -inf
    %409 = vmax.xlane.f32.xlu0 %v408
    %v410 = vpop.xlane.xlu0 %409
    %v411 = vsel %vm407, %v377, -inf
    %412 = vmax.xlane.f32.xlu0 %v411
    %v413 = vpop.xlane.xlu0 %412
    %v414 = vsub.f32 %v372, %v410
    %v415 = vsub.f32 %v377, %v413
    %v416 = vsel %vm380, %v387, %v396
    %v417 = vsel %vm380, %v388, %v397
    %v418 = vsel %vm109, %v416, %v405
    %v419 = vsel %vm109, %v417, %v406
    %vm420 = vcmask 195584
    %v421 = vsel %vm420, %v418, %v414
    %v422 = vsel %vm420, %v419, %v415
    %v423 = vmul.f32 %v421, 1.442695
    %v424 = vpow.pop %v423
    %v425 = vmul.f32 %v422, 1.442695
    %v426 = vpow.pop %v425
    %v427 = vld [vmem:[#allocation10] sm:$0xff]
    %v428 = vld [vmem:[#allocation10 + $0x8] sm:$0xff]
    %v429 = vld [vmem:[#allocation10 + $0x10] sm:$0xff]
    %v430 = vld [vmem:[#allocation10 + $0x18] sm:$0xff]
    %v432 = vsel %vm204, %v424, 0
    %v435 = vsel %vm204, %v426, 0
    %437 = vmatprep.subr.mxu0 0.0
    %438 = vmatpush1.msra.mxu0 %v427
    %439 = vmatprep.subr.mxu0 0.0
    %440 = vmatpush1.msra.mxu0 %v428
    %441 = vmatprep.subr.mxu0 0.0
    %442 = vmatpush1.msra.mxu0 %v429
    %443 = vmatprep.subr.mxu0 0.0
    %444 = vmatpush1.msra.mxu0 %v430
    %445 = vmatprep.subr.mxu0 0.0
    %446 = vmatpush1.msra.mxu0 0.0
    %447 = vmatprep.subr.mxu0 0.0
    %448 = vmatpush1.msra.mxu0 0.0
    %449 = vmatprep.subr.mxu0 0.0
    %450 = vmatpush1.msra.mxu0 0.0
    %451 = vmatprep.subr.mxu0 0.0
    %452 = vmatpush1.msra.mxu0 0.0
    %453 = vmatprep.subr.mxu0 0.0
    %454 = vmatpush1.msra.mxu0 0.0
    %455 = vmatprep.subr.mxu0 0.0
    %456 = vmatpush1.msra.mxu0 0.0
    %457 = vmatprep.subr.mxu0 0.0
    %458 = vmatpush1.msra.mxu0 0.0
    %459 = vmatprep.subr.mxu0 0.0
    %460 = vmatpush1.msra.mxu0 0.0
    %461 = vmatprep.subr.mxu0 0.0
    %462 = vmatpush1.msra.mxu0 0.0
    %463 = vmatprep.subr.mxu0 0.0
    %464 = vmatpush1.msra.mxu0 0.0
    %465 = vmatprep.subr.mxu0 0.0
    %466 = vmatpush1.msra.mxu0 0.0
    %467 = vmatprep.subr.mxu0 0.0
    %468 = vmatpush1.msra.mxu0 0.0
    %469 = vmatprep.subr.mxu0 0.0
    %470 = vmatpush1.msra.mxu0 0.0
    %471 = vmatprep.subr.mxu0 0.0
    %472 = vmatpush1.msra.mxu0 0.0
    %473 = vmatprep.subr.mxu0 0.0
    %474 = vmatpush1.msra.mxu0 0.0
    %475 = vmatprep.subr.mxu0 0.0
    %476 = vmatpush1.msra.mxu0 0.0
    %477 = vmatprep.subr.mxu0 0.0
    %478 = vmatpush1.msra.mxu0 0.0
    %479 = vmatprep.subr.mxu0 0.0
    %480 = vmatpush1.msra.mxu0 0.0
    %481 = vmatprep.subr.mxu0 0.0
    %482 = vmatpush1.msra.mxu0 0.0
    %483 = vmatprep.subr.mxu0 0.0
    %484 = vmatpush1.msra.mxu0 0.0
    %485 = vmatprep.subr.mxu0 0.0
    %486 = vmatpush1.msra.mxu0 0.0
    %487 = vmatprep.subr.mxu0 0.0
    %488 = vmatpush1.msra.mxu0 0.0
    %489 = vmatprep.subr.mxu0 0.0
    %490 = vmatpush1.msra.mxu0 0.0
    %491 = vmatprep.subr.mxu0 0.0
    %492 = vmatpush1.msra.mxu0 0.0
    %493 = vmatprep.subr.mxu0 0.0
    %494 = vmatpush1.msra.mxu0 0.0
    %495 = vmatprep.subr.mxu0 0.0
    %496 = vmatpush1.msra.mxu0 0.0
    %497 = vmatprep.subr.mxu0 0.0
    %498 = vmatpush1.msra.mxu0 0.0
    %499 = vmatprep.subr.mxu0 0.0
    %500 = vmatpush1.msra.mxu0 0.0
    %501 = vmatprep.mubr.f32.mxu0 0.0
    %502 = vmatmul.mubr.f32.gmra.mrb[0].mxu0 %v432
    %v503 = vpop.f32.mrb[0].mxu0
    %v504 = vadd.f32 0.0, %v503
    %v505 = vpop.f32.mrb[0].mxu0
    %506 = vmatprep.mubr.f32.mxu0 0.0
    %507 = vmatmul.mubr.f32.gmra.mrb[0].mxu0 %v435
    %v508 = vpop.f32.mrb[0].mxu0
    %v509 = vadd.f32 0.0, %v508
    %v510 = vpop.f32.mrb[0].mxu0
    %511 = vdwg.mxu0
    %v512 = vrcp.pop %v504
    %v513 = vrcp.pop %v509
    %v514 = vmul.f32 %v424, %v512
    %v515 = vmul.f32 %v426, %v513
    %516 = vst.msk [vmem:[#allocation11] sm:$0xff] %vm204, %v514
    %517 = vst.msk [vmem:[#allocation11 + $0x8] sm:$0xff] %vm204, %v515
    // Predicated region
    $region54: #{tpu_custom_call.1} parent=1 // pred_check
      _
    $region55: #{tpu_custom_call.1} parent=1 // pred_check_branch
      %519 = sbr.rel (0) target = $region57
    $region56: #{tpu_custom_call.1} parent=1 // pred_region
      %s521 = ssub.s32 256, 256
      %522 = vsyncadd [#allocation4], %s521
      %s523 = sshll.u32 [#allocation11], 4
      %s524 = int_to_ptr.vmem [resolvable:$true] %s523
      %529 = dma.vmem_to_hbm [thread:$0]  %s524, 256, %s8, [#allocation4], 128, 128, 8
    $region57: #{tpu_custom_call.1} parent=1 // pred_fallthru
      _
    // Predicated region
    $region58: #{tpu_custom_call.1} parent=1 // pred_check
      _
    $region59: #{tpu_custom_call.1} parent=1 // pred_check_branch
      %531 = sbr.rel (0) target = $region61
    $region60: #{tpu_custom_call.1} parent=1 // pred_region
      %532 = dma.done [#allocation4], 256
    $region61: #{tpu_custom_call.1} parent=1 // pred_fallthru
      _
    %533 = vsyncpa [#allocation3], 1
    %534 = vsyncpa [#allocation6], 1
    %535 = vsyncpa [#allocation9], 1
    %536 = vsyncpa [#allocation4], 1

</llo_original>
